<compile_context>
chip_gen: v6e
topology: v6e:2x2x1
jax: 0.10.0
libtpu: 0.0.40
codegen_flags: <defaults>
</compile_context>

<pallas_src>
import math

import jax
import jax.numpy as jnp
from jax.experimental import pallas as pl
from jax.experimental.pallas import tpu as pltpu

# Above default scoped limits on all generations, comfortably below v7x's 64 MiB
# physical VMEM. Per-step footprints with the default tile prefs are <= ~9 MiB.
_VMEM_LIMIT = 48 * 1024 * 1024


# ----------------------------- helpers -----------------------------

def _sublane_align(dtype) -> int:
    """Minimum legal sublane tile for a dtype (8 for f32, 16 for bf16, 32 for int8)."""
    return max(8, 32 // jnp.dtype(dtype).itemsize)


def _pick_block(dim: int, pref: int, align: int) -> int:
    """Largest divisor of `dim` that is <= pref and a multiple of `align`;
    falls back to the full dimension (always a legal block shape)."""
    if dim <= pref:
        return dim
    t = (pref // align) * align
    while t >= align:
        if dim % t == 0:
            return t
        t -= align
    return dim


# ----------------------------- kernels -----------------------------

def _headwise_proj_kernel(x_ref, w_ref, o_ref, acc_ref):
    """Per-head projection: grid (g=head-slab, i=row tile, k=reduction tile).

    x_ref: (tm, tk), w_ref: (1, tk, d_k), o_ref: (1, tm, d_k), acc: (tm, d_k) f32.
    """
    @pl.when(pl.program_id(2) == 0)
    def _():
        acc_ref[...] = jnp.zeros_like(acc_ref)

    acc_ref[...] += jnp.dot(x_ref[...], w_ref[0],
                            preferred_element_type=jnp.float32)

    # Store only on the last reduction step (no per-K-step cast/store).
    @pl.when(pl.program_id(2) == pl.num_programs(2) - 1)
    def _():
        o_ref[0] = acc_ref[...].astype(o_ref.dtype)


def _out_proj_kernel(o_ref, w_ref, y_ref, acc_ref):
    """Output projection: grid (i=row tile, j=col tile, h=head reduction).

    o_ref: (1, tm, d_k), w_ref: (1, d_k, tn), y_ref: (tm, tn), acc: (tm, tn) f32.
    """
    @pl.when(pl.program_id(2) == 0)
    def _():
        acc_ref[...] = jnp.zeros_like(acc_ref)

    acc_ref[...] += jnp.dot(o_ref[0], w_ref[0],
                            preferred_element_type=jnp.float32)

    @pl.when(pl.program_id(2) == pl.num_programs(2) - 1)
    def _():
        y_ref[...] = acc_ref[...].astype(y_ref.dtype)


def _attn_kernel(q_ref, k_ref, v_ref, o_ref, m_sc, l_sc, acc_sc):
    """Flash-attention step for one (batch, head, q_tile, kv_tile) grid point.

    The 1/sqrt(d_k) scale is pre-folded into Wq, so no in-kernel scaling.
    MXU operands are bf16, accumulation is f32.
    """
    ki = pl.program_id(3)

    @pl.when(ki == 0)
    def _():
        m_sc[...] = jnp.full_like(m_sc, -jnp.inf)
        l_sc[...] = jnp.zeros_like(l_sc)
        acc_sc[...] = jnp.zeros_like(acc_sc)

    q = q_ref[0].astype(jnp.bfloat16)   # (tq, d_k)  (scale already in Wq)
    k = k_ref[0].astype(jnp.bfloat16)   # (tk, d_k)
    v = v_ref[0].astype(jnp.bfloat16)   # (tk, d_k)

    # s = q @ k^T  (contract d_k)
    s = jax.lax.dot_general(q, k, (((1,), (1,)), ((), ())),
                            preferred_element_type=jnp.float32)   # (tq, tk)

    m_prev = m_sc[...]                                            # (tq, 1)
    m_new = jnp.maximum(m_prev, s.max(axis=-1, keepdims=True))
    alpha = jnp.exp(m_prev - m_new)
    p = jnp.exp(s - m_new)                                        # (tq, tk)

    l_sc[...] = alpha * l_sc[...] + p.sum(axis=-1, keepdims=True)
    acc_sc[...] = alpha * acc_sc[...] + jnp.dot(
        p.astype(jnp.bfloat16), v, preferred_element_type=jnp.float32)
    m_sc[...] = m_new

    @pl.when(ki == pl.num_programs(3) - 1)
    def _():
        inv_l = pl.reciprocal(l_sc[...], approx=True)
        o_ref[0] = (acc_sc[...] * inv_l).astype(o_ref.dtype)


# ----------------------------- pallas_call wrappers -----------------------------

def _headwise_proj(x2d, w_h, *, tm_pref=512, tk_pref=512):
    """x2d: (M, K), w_h: (G, K, d_k) -> (G, M, d_k), head-major output layout."""
    M, K = x2d.shape
    G, K2, dk = w_h.shape
    assert K == K2
    tm = _pick_block(M, tm_pref, _sublane_align(x2d.dtype))
    tk = _pick_block(K, tk_pref, 128)
    grid = (G, M // tm, K // tk)

    return pl.pallas_call(
        _headwise_proj_kernel,
        out_shape=jax.ShapeDtypeStruct((G, M, dk), x2d.dtype),
        grid_spec=pltpu.PrefetchScalarGridSpec(
            num_scalar_prefetch=0,
            grid=grid,
            in_specs=[
                pl.BlockSpec((tm, tk), lambda g, i, kk: (i, kk)),
                pl.BlockSpec((1, tk, dk), lambda g, i, kk: (g, kk, 0)),
            ],
            out_specs=pl.BlockSpec((1, tm, dk), lambda g, i, kk: (g, i, 0)),
            scratch_shapes=[pltpu.VMEM((tm, dk), jnp.float32)],
        ),
        compiler_params=pltpu.CompilerParams(
            dimension_semantics=("parallel", "parallel", "arbitrary"),
            vmem_limit_bytes=_VMEM_LIMIT),
    )(x2d, w_h)


def _headwise_out_proj(o_h, wo_h, *, tm_pref=512, tn_pref=512):
    """o_h: (H, M, d_k), wo_h: (H, d_k, N) -> (M, N). Head axis is the reduction."""
    H, M, dk = o_h.shape
    H2, dk2, N = wo_h.shape
    assert H == H2 and dk == dk2
    tm = _pick_block(M, tm_pref, _sublane_align(o_h.dtype))
    tn = _pick_block(N, tn_pref, 128)
    grid = (M // tm, N // tn, H)

    return pl.pallas_call(
        _out_proj_kernel,
        out_shape=jax.ShapeDtypeStruct((M, N), o_h.dtype),
        grid_spec=pltpu.PrefetchScalarGridSpec(
            num_scalar_prefetch=0,
            grid=grid,
            in_specs=[
                pl.BlockSpec((1, tm, dk), lambda i, j, h: (h, i, 0)),
                pl.BlockSpec((1, dk, tn), lambda i, j, h: (h, 0, j)),
            ],
            out_specs=pl.BlockSpec((tm, tn), lambda i, j, h: (i, j)),
            scratch_shapes=[pltpu.VMEM((tm, tn), jnp.float32)],
        ),
        compiler_params=pltpu.CompilerParams(
            dimension_semantics=("parallel", "parallel", "arbitrary"),
            vmem_limit_bytes=_VMEM_LIMIT),
    )(o_h, wo_h)


def _flash_attention(qa, ka, va, *, B, H, Sq, Sk, dk, out_dtype,
                     q_off=0, k_off=0, v_off=0, tq_pref=512, tkv_pref=512):
    """Flash attention over head-major buffers.

    qa: (>=q_off+H, B*Sq, dk), ka/va: (>=k_off+H / >=v_off+H, B*Sk, dk).
    The head offsets let q/k/v all point into one fused qkv buffer (zero-copy).
    Returns (H, B*Sq, dk).
    """
    tq = _pick_block(Sq, tq_pref, _sublane_align(qa.dtype))
    tkv = _pick_block(Sk, tkv_pref, _sublane_align(ka.dtype))
    nq = Sq // tq
    nkv = Sk // tkv
    grid = (B, H, nq, nkv)

    def q_map(b, h, qi, ki):
        return (q_off + h, b * nq + qi, 0)

    def k_map(b, h, qi, ki):
        return (k_off + h, b * nkv + ki, 0)

    def v_map(b, h, qi, ki):
        return (v_off + h, b * nkv + ki, 0)

    def o_map(b, h, qi, ki):
        return (h, b * nq + qi, 0)

    return pl.pallas_call(
        _attn_kernel,
        out_shape=jax.ShapeDtypeStruct((H, B * Sq, dk), out_dtype),
        grid_spec=pltpu.PrefetchScalarGridSpec(
            num_scalar_prefetch=0,
            grid=grid,
            in_specs=[
                pl.BlockSpec((1, tq, dk), q_map),
                pl.BlockSpec((1, tkv, dk), k_map),
                pl.BlockSpec((1, tkv, dk), v_map),
            ],
            out_specs=pl.BlockSpec((1, tq, dk), o_map),
            scratch_shapes=[
                pltpu.VMEM((tq, 1), jnp.float32),    # running max
                pltpu.VMEM((tq, 1), jnp.float32),    # running denominator
                pltpu.VMEM((tq, dk), jnp.float32),   # running numerator
            ],
        ),
        compiler_params=pltpu.CompilerParams(
            dimension_semantics=("parallel", "parallel", "parallel", "arbitrary"),
            vmem_limit_bytes=_VMEM_LIMIT),
    )(qa, ka, va)


# ----------------------------- module -----------------------------

class MultiHeadAttention:
    """JAX/Pallas port of the PyTorch MultiHeadAttention module (bias-free Linears)."""

    def __init__(self, d_model: int, h: int, dropout: float, *, key=None,
                 dtype=jnp.float32):
        assert d_model % h == 0, "d_model should be divisible by h"
        self.d_model = d_model
        self.h = h
        self.d_k = d_model // h
        self.rate = float(dropout)

        key = jax.random.PRNGKey(0) if key is None else key
        kq, kk, kv, ko = jax.random.split(key, 4)
        limit = 1.0 / math.sqrt(d_model)  # nn.Linear default U(-1/sqrt(in), 1/sqrt(in))

        def init(k):
            return jax.random.uniform(k, (d_model, d_model), dtype, -limit, limit)

        # Stored pre-transposed so y = x @ w_t (== x @ W.T for a PyTorch weight W).
        # These (unscaled, merged-head) copies are kept for the reference check.
        self.wq_t = init(kq)
        self.wk_t = init(kk)
        self.wv_t = init(kv)
        self.wo_t = init(ko)

        # Head-major weights consumed by the kernels (one-time init transforms).
        def to_heads(wt):                                   # (D, D) -> (H, D, d_k)
            return wt.reshape(d_model, h, self.d_k).transpose(1, 0, 2)

        scale = 1.0 / math.sqrt(self.d_k)
        self.wq_h = to_heads(self.wq_t) * scale             # 1/sqrt(d_k) folded in
        self.wk_h = to_heads(self.wk_t)
        self.wv_h = to_heads(self.wv_t)
        # Fused QKV weight (3H, D, d_k) for the self-attention fast path: x read once,
        # q/k/v head slabs addressed directly by the attention kernel's index_maps.
        self.w_qkv_h = jnp.concatenate([self.wq_h, self.wk_h, self.wv_h], axis=0)
        # Output projection split by head: out = sum_h o_h @ wo_h[h].
        self.wo_h = self.wo_t.reshape(h, self.d_k, d_model)

    def __call__(self, q, k, v, mask=None):
        B, Sq, D = q.shape
        Sk = k.shape[1]
        assert D == self.d_model and v.shape[1] == Sk
        H, dk = self.h, self.d_k

        if q is k and k is v:
            # Fused QKV projection straight into head-major layout (3H, B*S, d_k).
            qkv = _headwise_proj(q.reshape(B * Sq, D), self.w_qkv_h)
            o_h = _flash_attention(qkv, qkv, qkv, B=B, H=H, Sq=Sq, Sk=Sq, dk=dk,
                                   out_dtype=q.dtype, q_off=0, k_off=H, v_off=2 * H)
        else:
            qh = _headwise_proj(q.reshape(B * Sq, D), self.wq_h)   # (H, B*Sq, d_k)
            kh = _headwise_proj(k.reshape(B * Sk, D), self.wk_h)   # (H, B*Sk, d_k)
            vh = _headwise_proj(v.reshape(B * Sk, D), self.wv_h)   # (H, B*Sk, d_k)
            o_h = _flash_attention(qh, kh, vh, B=B, H=H, Sq=Sq, Sk=Sk, dk=dk,
                                   out_dtype=q.dtype)

        # Output projection consumes the head-major attention output directly
        # (head axis is the in-kernel reduction) — no merge-heads transpose.
        out2d = _headwise_out_proj(o_h, self.wo_h)                 # (B*Sq, D)
        return out2d.reshape(B, Sq, D)


# ----------------------------- reference + test -----------------------------

def _mha_reference(q, k, v, wq_t, wk_t, wv_t, wo_t, h):
    B, Sq, D = q.shape
    Sk = k.shape[1]
    dk = D // h
    Q = (q @ wq_t).reshape(B, Sq, h, dk).transpose(0, 2, 1, 3)
    K = (k @ wk_t).reshape(B, Sk, h, dk).transpose(0, 2, 1, 3)
    V = (v @ wv_t).reshape(B, Sk, h, dk).transpose(0, 2, 1, 3)
    s = jnp.einsum("bhqd,bhkd->bhqk", Q, K) / math.sqrt(dk)
    p = jax.nn.softmax(s, axis=-1)
    o = jnp.einsum("bhqk,bhkd->bhqd", p, V)
    o = o.transpose(0, 2, 1, 3).reshape(B, Sq, D)
    return o @ wo_t


if __name__ == "__main__":
    B, S, D, H = 2, 8, 32, 4
    key = jax.random.PRNGKey(0)
    kx, km, kp = jax.random.split(key, 3)
    x = jax.random.normal(kx, (B, S, D), dtype=jnp.float32)

    mha = MultiHeadAttention(d_model=D, h=H, dropout=0.1, key=kp)

    # Self-attention (fused QKV path), eval mode.
    y = mha(x, x, x, mask=None)
    y = jax.block_until_ready(y)
    ref = _mha_reference(x, x, x, mha.wq_t, mha.wk_t, mha.wv_t, mha.wo_t, H)
    assert y.shape == (B, S, D)
    assert jnp.allclose(y, ref, atol=2e-2, rtol=2e-2), "self-attn mismatch vs reference"

    # Cross-attention (separate projections), different memory length.
    Skv = 16
    mem = jax.random.normal(km, (B, Skv, D), dtype=jnp.float32)
    y2 = mha(x, mem, mem, mask=None)
    y2 = jax.block_until_ready(y2)
    ref2 = _mha_reference(x, mem, mem, mha.wq_t, mha.wk_t, mha.wv_t, mha.wo_t, H)
    assert y2.shape == (B, S, D)
    assert jnp.allclose(y2, ref2, atol=2e-2, rtol=2e-2), "cross-attn mismatch vs reference"

    print("KERNEL_OK")
</pallas_src>

<mosaic_0001>
module attributes {stable_mosaic.version = 11 : i64} {
  func.func @_headwise_proj_kernel(%arg0: i32, %arg1: i32, %arg2: i32, %arg3: memref<16x32xf32, #tpu.memory_space<vmem>>, %arg4: memref<1x32x8xf32, #tpu.memory_space<vmem>>, %arg5: memref<1x16x8xf32, #tpu.memory_space<vmem>>, %arg6: memref<16x8xf32, #tpu.memory_space<vmem>>) attributes {dimension_semantics = [#tpu.dimension_semantics<parallel>, #tpu.dimension_semantics<parallel>, #tpu.dimension_semantics<arbitrary>], iteration_bounds = array<i64: 12, 1, 1>, scalar_prefetch = 0 : i64, scratch_operands = 1 : i64, tpu.core_type = #tpu.core_type<tc>, window_params = [{transform_indices = @transform_0, window_bounds = array<i64: 16, 32>}, {transform_indices = @transform_1, window_bounds = array<i64: 1, 32, 8>}, {transform_indices = @transform_2, window_bounds = array<i64: 1, 16, 8>}]} {
    %c0_i32 = arith.constant 0 : i32
    %0 = arith.cmpi eq, %arg2, %c0_i32 : i32
    %1 = arith.extui %0 : i1 to i32
    %c0_i32_0 = arith.constant 0 : i32
    %2 = arith.cmpi ne, %1, %c0_i32_0 : i32
    scf.if %2 {
      %cst_11 = arith.constant 0.000000e+00 : f32
      %13 = vector.broadcast %cst_11 : f32 to vector<16x8xf32>
      %c0_12 = arith.constant 0 : index
      %c0_13 = arith.constant 0 : index
      %14 = vector.load %arg6[%c0_12, %c0_13] : memref<16x8xf32, #tpu.memory_space<vmem>>, vector<16x8xf32>
      tpu.vector_store %arg6[%c0_12, %c0_13], %13 {strides = array<i32>} : memref<16x8xf32, #tpu.memory_space<vmem>>, vector<16x8xf32>,
    } else {
    }
    %c0 = arith.constant 0 : index
    %c0_1 = arith.constant 0 : index
    %3 = vector.load %arg6[%c0, %c0_1] : memref<16x8xf32, #tpu.memory_space<vmem>>, vector<16x8xf32>
    %c0_2 = arith.constant 0 : index
    %c0_3 = arith.constant 0 : index
    %4 = vector.load %arg3[%c0_2, %c0_3] : memref<16x32xf32, #tpu.memory_space<vmem>>, vector<16x32xf32>
    %c0_4 = arith.constant 0 : index
    %c0_5 = arith.constant 0 : index
    %c0_6 = arith.constant 0 : index
    %5 = vector.load %arg4[%c0_4, %c0_5, %c0_6] : memref<1x32x8xf32, #tpu.memory_space<vmem>>, vector<1x32x8xf32>
    %6 = vector.shape_cast %5 : vector<1x32x8xf32> to vector<32x8xf32>
    %cst = arith.constant dense<0.000000e+00> : vector<16x8xf32>
    %7 = tpu.matmul %4, %6, %cst {dimension_numbers = #tpu.dot_dimension_numbers<[1], [0], [0], [1], [0, 0, 1, 1], [], []>} : vector<16x32xf32>, vector<32x8xf32>, vector<16x8xf32> -> vector<16x8xf32>
    %8 = arith.addf %3, %7 : vector<16x8xf32>
    %c0_7 = arith.constant 0 : index
    %c0_8 = arith.constant 0 : index
    %9 = vector.load %arg6[%c0_7, %c0_8] : memref<16x8xf32, #tpu.memory_space<vmem>>, vector<16x8xf32>
    tpu.vector_store %arg6[%c0_7, %c0_8], %8 {strides = array<i32>} : memref<16x8xf32, #tpu.memory_space<vmem>>, vector<16x8xf32>,
    %c0_i32_9 = arith.constant 0 : i32
    %10 = arith.cmpi eq, %arg2, %c0_i32_9 : i32
    %11 = arith.extui %10 : i1 to i32
    %c0_i32_10 = arith.constant 0 : i32
    %12 = arith.cmpi ne, %11, %c0_i32_10 : i32
    scf.if %12 {
      %c0_11 = arith.constant 0 : index
      %c0_12 = arith.constant 0 : index
      %13 = vector.load %arg6[%c0_11, %c0_12] : memref<16x8xf32, #tpu.memory_space<vmem>>, vector<16x8xf32>
      %c0_13 = arith.constant 0 : index
      %c0_14 = arith.constant 0 : index
      %c0_15 = arith.constant 0 : index
      %14 = vector.load %arg5[%c0_13, %c0_14, %c0_15] : memref<1x16x8xf32, #tpu.memory_space<vmem>>, vector<1x16x8xf32>
      %15 = vector.shape_cast %14 : vector<1x16x8xf32> to vector<16x8xf32>
      %16 = vector.shape_cast %13 : vector<16x8xf32> to vector<1x16x8xf32>
      tpu.vector_store %arg5[%c0_13, %c0_14, %c0_15], %16 {strides = array<i32>} : memref<1x16x8xf32, #tpu.memory_space<vmem>>, vector<1x16x8xf32>,
    } else {
    }
    return
  }
  func.func @transform_0(%arg0: i32, %arg1: i32, %arg2: i32) -> (i32, i32) {
    %c0_i32 = arith.constant 0 : i32
    return %arg1, %arg2 : i32, i32
  }
  func.func @transform_1(%arg0: i32, %arg1: i32, %arg2: i32) -> (i32, i32, i32) {
    %c0_i32 = arith.constant 0 : i32
    %c0_i32_0 = arith.constant 0 : i32
    return %arg0, %arg2, %c0_i32 : i32, i32, i32
  }
  func.func @transform_2(%arg0: i32, %arg1: i32, %arg2: i32) -> (i32, i32, i32) {
    %c0_i32 = arith.constant 0 : i32
    %c0_i32_0 = arith.constant 0 : i32
    return %arg0, %arg1, %c0_i32 : i32, i32, i32
  }
}

</mosaic_0001>

<llo_original>
// kernel: tpu_custom_call.1
$region0: #{tpu_custom_call.1}
  #allocation0 [shape = 'u32[]', space=smem, size = 0x4, offset = 0x4, fixed_abs, tag = 'smem constant byte address 0x4 - core index']
  #allocation1 [shape = 'u32[144,128]{1,0:T(1,128)}', space=vmem, size = 0x12000, scoped, tag = 'internal scratch']
  #allocation2 [shape = 'f32[16,8]{1,0:T(8,128)}', space=vmem, size = 0x2000, scoped, tag = 'scratch operand']
  %s0 = inlined_call_operand.vmem [shape: f32[16,32], index: 0, kind: input, shape index: {}]
  %s1 = inlined_call_operand.vmem [shape: f32[12,32,8], index: 1, kind: input, shape index: {}]
  %s2 = inlined_call_operand.vmem [shape: f32[12,16,8], index: 2, kind: output, shape index: {}]
  %s3 = sld [smem:[#allocation0]]
  $region49: #{tpu_custom_call.1} parent=0
    _
  %s5 = ssub.s32 1, %s3
  %s6 = scalar_select 0, %s5, %s3
  loop: start=0, step=1, limit=14
  $region2: #{tpu_custom_call.1} parent=0 // loop_pre_header
    _
  $region3: #{tpu_custom_call.1} parent=0 // loop_header
    %s8 = sphi 0, %s12
    %p9 = scmp.ge.s32.totalorder %s8, 14
    %s15 = sphi 0, %s34
    %s16 = sphi 0, %s30
    %s17 = sphi 0, %s26
    %s18 = sphi 0, %s15
    %s19 = sphi 0, %s16
    %s20 = sphi 0, %s17
    %s21 = sphi 0, %s18
    %s22 = sphi 0, %s19
    %s23 = sphi 0, %s20
    %s39 = sphi 0, %s41
    %s42 = sphi 0, %s39
    %s43 = sphi 0, %s42
    %s59 = sphi 0, %s43
    %s67 = sphi 0, %s69
    %s70 = sphi 0, %s67
    %s71 = sphi 0, %s70
    %s87 = sphi 0, %s71
    %s95 = sphi 0, %s97
    %s98 = sphi 0, %s95
    %s99 = sphi 0, %s98
    %s115 = sphi 0, %s99
  $region4: #{tpu_custom_call.1} parent=0 // loop_header_branch
    %11 = sbr.rel (%p9) target = $region8
  $region5: #{tpu_custom_call.1} parent=0 // loop_body
    %s13 = ssub.s32 %s8, 1
    %s14 = ssub.s32 %s8, 2
    %s24 = sadd.s32 1, %s17
    %p25 = scmp.ge.s32.totalorder %s24, 1
    %s26 = scalar_select %p25, 0, %s24
    %s27 = sadd.s32 1, %s16
    %s28 = scalar_select %p25, %s27, %s16
    %p29 = scmp.ge.s32.totalorder %s28, 1
    %s30 = scalar_select %p29, 0, %s28
    %s31 = sadd.s32 1, %s15
    %s32 = scalar_select %p29, %s31, %s15
    %p33 = scmp.ge.s32.totalorder %s32, 12
    %s34 = scalar_select %p33, 0, %s32
    %s35 = ssub.s32 %s16, %s30
    %s36 = ssub.s32 %s17, %s26
    %s37 = sor.u32 %s35, %s36
    %p38 = scmp.eq.s32.totalorder %s37, 0
    %s40 = sadd.s32 %s39, 1
    %s41 = scalar_select %p38, %s39, %s40
    %p44 = pneg %p38
    %p45 = scmp.eq.s32.totalorder %s8, 11
    %p46 = por %p44, %p45
    %p47 = scmp.ne.s32.totalorder %s39, %s42
    %p48 = scmp.eq.s32.totalorder %s8, 0
    %p49 = por %p47, %p48
    %p50 = scmp.ne.s32.totalorder %s39, %s42
    %p51 = scmp.eq.s32.totalorder %s13, 11
    %p52 = por %p50, %p51
    %p53 = scmp.ne.s32.totalorder %s42, %s43
    %p54 = scmp.eq.s32.totalorder %s13, 0
    %p55 = por %p53, %p54
    %p56 = scmp.ne.s32.totalorder %s42, %s43
    %p57 = scmp.eq.s32.totalorder %s14, 11
    %p58 = por %p56, %p57
    %p60 = scmp.ne.s32.totalorder %s43, %s59
    %p61 = scmp.eq.s32.totalorder %s14, 0
    %p62 = por %p60, %p61
    %s63 = ssub.s32 %s15, %s34
    %s64 = ssub.s32 %s17, %s26
    %s65 = sor.u32 %s63, %s64
    %p66 = scmp.eq.s32.totalorder %s65, 0
    %s68 = sadd.s32 %s67, 1
    %s69 = scalar_select %p66, %s67, %s68
    %p72 = pneg %p66
    %p73 = scmp.eq.s32.totalorder %s8, 11
    %p74 = por %p72, %p73
    %p75 = scmp.ne.s32.totalorder %s67, %s70
    %p76 = scmp.eq.s32.totalorder %s8, 0
    %p77 = por %p75, %p76
    %p78 = scmp.ne.s32.totalorder %s67, %s70
    %p79 = scmp.eq.s32.totalorder %s13, 11
    %p80 = por %p78, %p79
    %p81 = scmp.ne.s32.totalorder %s70, %s71
    %p82 = scmp.eq.s32.totalorder %s13, 0
    %p83 = por %p81, %p82
    %p84 = scmp.ne.s32.totalorder %s70, %s71
    %p85 = scmp.eq.s32.totalorder %s14, 11
    %p86 = por %p84, %p85
    %p88 = scmp.ne.s32.totalorder %s71, %s87
    %p89 = scmp.eq.s32.totalorder %s14, 0
    %p90 = por %p88, %p89
    %s91 = ssub.s32 %s15, %s34
    %s92 = ssub.s32 %s16, %s30
    %s93 = sor.u32 %s91, %s92
    %p94 = scmp.eq.s32.totalorder %s93, 0
    %s96 = sadd.s32 %s95, 1
    %s97 = scalar_select %p94, %s95, %s96
    %p100 = pneg %p94
    %p101 = scmp.eq.s32.totalorder %s8, 11
    %p102 = por %p100, %p101
    %p103 = scmp.ne.s32.totalorder %s95, %s98
    %p104 = scmp.eq.s32.totalorder %s8, 0
    %p105 = por %p103, %p104
    %p106 = scmp.ne.s32.totalorder %s95, %s98
    %p107 = scmp.eq.s32.totalorder %s13, 11
    %p108 = por %p106, %p107
    %p109 = scmp.ne.s32.totalorder %s98, %s99
    %p110 = scmp.eq.s32.totalorder %s13, 0
    %p111 = por %p109, %p110
    %p112 = scmp.ne.s32.totalorder %s98, %s99
    %p113 = scmp.eq.s32.totalorder %s14, 11
    %p114 = por %p112, %p113
    %p116 = scmp.ne.s32.totalorder %s99, %s115
    %p117 = scmp.eq.s32.totalorder %s14, 0
    %p118 = por %p116, %p117
    %p119 = scmp.le.s32.totalorder 1, %s8
    %p120 = scmp.lt.s32.totalorder %s8, 13
    %p121 = pnand %p119, %p120
    %p122 = pneg %p121
    // Predicated region
    $region9: #{tpu_custom_call.1} parent=5 // pred_check
      _
    $region10: #{tpu_custom_call.1} parent=5 // pred_check_branch
      %124 = sbr.rel (%p121) target = $region12
    $region11: #{tpu_custom_call.1} parent=5 // pred_region
      %s125 = ssub.s32 %s8, 1
      // Predicated region
      $region13: #{tpu_custom_call.1} parent=11 // pred_check
        %p126 = pneg %p55
      $region14: #{tpu_custom_call.1} parent=11 // pred_check_branch
        %128 = sbr.rel (%p126) target = $region16
      $region15: #{tpu_custom_call.1} parent=11 // pred_region
        %s129 = smul.u32 2, %s19
        %p130 = scmp.lt.s32.totalorder %s129, 1
        %s131 = scalar_select %p130, %s129, 1
        %p132 = scmp.lt.s32.totalorder %s20, 0
        %s133 = scalar_select %p132, %s20, 0
        %s134 = sadd.s32 %s133, %s131
        %s135 = smul.addr %s134, 8
        %s136 = scalar_lea.vmem %s0, %s135
        %s137 = smul.u32 2, %s19
      $region16: #{tpu_custom_call.1} parent=11 // pred_fallthru
        _
    $region12: #{tpu_custom_call.1} parent=5 // pred_fallthru
      _
    %p138 = scmp.lt.s32.totalorder %s8, 12
    // Predicated region
    $region17: #{tpu_custom_call.1} parent=5 // pred_check
      %p139 = pneg %p138
    $region18: #{tpu_custom_call.1} parent=5 // pred_check_branch
      %141 = sbr.rel (%p139) target = $region20
    $region19: #{tpu_custom_call.1} parent=5 // pred_region
      // Predicated region
      $region21: #{tpu_custom_call.1} parent=19 // pred_check
        %p142 = pneg %p77
      $region22: #{tpu_custom_call.1} parent=19 // pred_check_branch
        %144 = sbr.rel (%p142) target = $region24
      $region23: #{tpu_custom_call.1} parent=19 // pred_region
        %s145 = smul.u32 4, %s17
        %p146 = scmp.lt.s32.totalorder %s15, 11
        %s147 = scalar_select %p146, %s15, 11
        %p148 = scmp.lt.s32.totalorder %s145, 3
        %s149 = scalar_select %p148, %s145, 3
        %s150 = smul.addr %s147, 4
        %s151 = sadd.s32 %s149, %s150
        %s152 = smul.addr %s151, 8
        %s153 = scalar_lea.vmem %s1, %s152
        %s154 = smul.u32 4, %s17
      $region24: #{tpu_custom_call.1} parent=19 // pred_fallthru
        _
    $region20: #{tpu_custom_call.1} parent=5 // pred_fallthru
      _
    %p155 = scmp.le.s32.totalorder 1, %s8
    %p156 = scmp.lt.s32.totalorder %s8, 13
    %p157 = pnand %p155, %p156
    %p158 = pneg %p157
    // Predicated region
    $region25: #{tpu_custom_call.1} parent=5 // pred_check
      _
    $region26: #{tpu_custom_call.1} parent=5 // pred_check_branch
      %160 = sbr.rel (%p157) target = $region28
    $region27: #{tpu_custom_call.1} parent=5 // pred_region
      %s161 = ssub.s32 %s8, 1
      %s162 = smul.u32 2, %s19
      %p163 = scmp.lt.s32.totalorder %s162, 1
      %s164 = scalar_select %p163, %s162, 1
      %p165 = scmp.lt.s32.totalorder %s20, 0
      %s166 = scalar_select %p165, %s20, 0
      %s167 = sadd.s32 %s166, %s164
      %s168 = smul.addr %s167, 8
      %s169 = scalar_lea.vmem %s0, %s168
      %p170 = pneg %p55
      %p171 = pneg %p52
      %s172 = smul.u32 4, %s20
      %p173 = scmp.lt.s32.totalorder %s18, 11
      %s174 = scalar_select %p173, %s18, 11
      %p175 = scmp.lt.s32.totalorder %s172, 3
      %s176 = scalar_select %p175, %s172, 3
      %s177 = smul.addr %s174, 4
      %s178 = sadd.s32 %s176, %s177
      %s179 = smul.addr %s178, 8
      %s180 = scalar_lea.vmem %s1, %s179
      %p181 = pneg %p83
      %p182 = pneg %p80
      %p183 = pneg %p111
      %p184 = pneg %p108
      %s185 = smul.u32 2, %s19
      %p186 = scmp.lt.s32.totalorder %s18, 11
      %s187 = scalar_select %p186, %s18, 11
      %p188 = scmp.lt.s32.totalorder %s185, 1
      %s189 = scalar_select %p188, %s185, 1
      %s190 = smul.addr %s187, 2
      %s191 = sadd.s32 %s189, %s190
      %s192 = smul.addr %s191, 8
      %s193 = scalar_lea.vmem %s2, %s192
      %s194 = smul.u32 2, %s19
      %p195 = scmp.lt.s32.totalorder %s194, 1
      %s196 = scalar_select %p195, %s194, 1
      %p197 = scmp.lt.s32.totalorder %s20, 0
      %s198 = scalar_select %p197, %s20, 0
      %s199 = sadd.s32 %s198, %s196
      %s200 = smul.addr %s199, 8
      %s201 = scalar_lea.vmem %s0, %s200
      %s202 = smul.u32 2, %s19
      %s203 = smul.u32 4, %s20
      %p204 = scmp.lt.s32.totalorder %s18, 11
      %s205 = scalar_select %p204, %s18, 11
      %p206 = scmp.lt.s32.totalorder %s203, 3
      %s207 = scalar_select %p206, %s203, 3
      %s208 = smul.addr %s205, 4
      %s209 = sadd.s32 %s207, %s208
      %s210 = smul.addr %s209, 8
      %s211 = scalar_lea.vmem %s1, %s210
      %s212 = smul.u32 4, %s20
      %s213 = smul.u32 2, %s19
      %p214 = scmp.lt.s32.totalorder %s18, 11
      %s215 = scalar_select %p214, %s18, 11
      %p216 = scmp.lt.s32.totalorder %s213, 1
      %s217 = scalar_select %p216, %s213, 1
      %s218 = smul.addr %s215, 2
      %s219 = sadd.s32 %s217, %s218
      %s220 = smul.addr %s219, 8
      %s221 = scalar_lea.vmem %s2, %s220
      %s222 = smul.u32 2, %s19
      %p223 = scmp.eq.s32.totalorder %s20, 0
      // Predicated region
      $region29: #{tpu_custom_call.1} parent=27 // pred_check
        %p224 = pneg %p223
      $region30: #{tpu_custom_call.1} parent=27 // pred_check_branch
        %226 = sbr.rel (%p224) target = $region32
      $region31: #{tpu_custom_call.1} parent=27 // pred_region
        %vm227 = vcmask 64512
        %228 = vst.msk [vmem:[#allocation2] sm:$0xff] %vm227, 0.0
        %229 = vst.msk [vmem:[#allocation2 + $0x8] sm:$0xff] %vm227, 0.0
      $region32: #{tpu_custom_call.1} parent=27 // pred_fallthru
        _
      %v230 = vld [vmem:[#allocation2] sm:$0xff]
      %v231 = vld [vmem:[#allocation2 + $0x8] sm:$0xff]
      %v232 = vld [vmem:[%s201] sm:$0xff]
      %v233 = vld [vmem:[%s201 + $0x8] sm:$0xff]
      %v234 = vld [vmem:[%s211] sm:$0xff]
      %v235 = vld [vmem:[%s211 + $0x8] sm:$0xff]
      %v236 = vld [vmem:[%s211 + $0x10] sm:$0xff]
      %v237 = vld [vmem:[%s211 + $0x18] sm:$0xff]
      %vm238 = vcmask 261120
      %v240 = vsel %vm238, %v232, 0
      %v243 = vsel %vm238, %v233, 0
      %245 = vmatprep.subr.mxu0 0.0
      %246 = vmatpush1.msra.mxu0 0.0
      %247 = vmatprep.subr.mxu0 0.0
      %248 = vmatpush1.msra.mxu0 0.0
      %249 = vmatprep.subr.mxu0 0.0
      %250 = vmatpush1.msra.mxu0 0.0
      %251 = vmatprep.subr.mxu0 0.0
      %252 = vmatpush1.msra.mxu0 0.0
      %253 = vmatprep.subr.mxu0 0.0
      %254 = vmatpush1.msra.mxu0 0.0
      %255 = vmatprep.subr.mxu0 0.0
      %256 = vmatpush1.msra.mxu0 0.0
      %257 = vmatprep.subr.mxu0 0.0
      %258 = vmatpush1.msra.mxu0 0.0
      %259 = vmatprep.subr.mxu0 0.0
      %260 = vmatpush1.msra.mxu0 0.0
      %261 = vmatprep.subr.mxu0 0.0
      %262 = vmatpush1.msra.mxu0 0.0
      %263 = vmatprep.subr.mxu0 0.0
      %264 = vmatpush1.msra.mxu0 0.0
      %265 = vmatprep.subr.mxu0 0.0
      %266 = vmatpush1.msra.mxu0 0.0
      %267 = vmatprep.subr.mxu0 0.0
      %268 = vmatpush1.msra.mxu0 0.0
      %269 = vmatprep.subr.mxu0 0.0
      %270 = vmatpush1.msra.mxu0 %v237
      %271 = vmatprep.subr.mxu0 0.0
      %272 = vmatpush1.msra.mxu0 %v236
      %273 = vmatprep.subr.mxu0 0.0
      %274 = vmatpush1.msra.mxu0 %v235
      %275 = vmatprep.subr.mxu0 0.0
      %276 = vmatpush1.msra.mxu0 %v234
      %277 = vmatprep.subr.mxu0 0.0
      %278 = vmatpush2.msra.mxu0 0.0
      %279 = vmatprep.subr.mxu0 0.0
      %280 = vmatpush2.msra.mxu0 0.0
      %281 = vmatprep.subr.mxu0 0.0
      %282 = vmatpush2.msra.mxu0 0.0
      %283 = vmatprep.subr.mxu0 0.0
      %284 = vmatpush2.msra.mxu0 0.0
      %285 = vmatprep.subr.mxu0 0.0
      %286 = vmatpush2.msra.mxu0 0.0
      %287 = vmatprep.subr.mxu0 0.0
      %288 = vmatpush2.msra.mxu0 0.0
      %289 = vmatprep.subr.mxu0 0.0
      %290 = vmatpush2.msra.mxu0 0.0
      %291 = vmatprep.subr.mxu0 0.0
      %292 = vmatpush2.msra.mxu0 0.0
      %293 = vmatprep.subr.mxu0 0.0
      %294 = vmatpush2.msra.mxu0 0.0
      %295 = vmatprep.subr.mxu0 0.0
      %296 = vmatpush2.msra.mxu0 0.0
      %297 = vmatprep.subr.mxu0 0.0
      %298 = vmatpush2.msra.mxu0 0.0
      %299 = vmatprep.subr.mxu0 0.0
      %300 = vmatpush2.msra.mxu0 0.0
      %301 = vmatprep.subr.mxu0 0.0
      %302 = vmatpush2.msra.mxu0 0.0
      %303 = vmatprep.subr.mxu0 0.0
      %304 = vmatpush2.msra.mxu0 0.0
      %305 = vmatprep.subr.mxu0 0.0
      %306 = vmatpush2.msra.mxu0 0.0
      %307 = vmatprep.subr.mxu0 0.0
      %308 = vmatpush2.msra.mxu0 0.0
      %309 = vmatprep.mubr.f32.mxu0 0.0
      %310 = vmatmul.mubr.f32.gmra.mxu0 %v240
      %v311 = vpop.f32.mrf.mxu0
      %v312 = vadd.f32 0.0, %v311
      %v313 = vpop.f32.mrf.mxu0
      %314 = vmatprep.mubr.f32.mxu0 0.0
      %315 = vmatmul.mubr.f32.gmra.mxu0 %v243
      %v316 = vpop.f32.mrf.mxu0
      %v317 = vadd.f32 0.0, %v316
      %v318 = vpop.f32.mrf.mxu0
      %319 = vdwg.mxu0
      %v320 = vadd.f32 %v230, %v312
      %v321 = vadd.f32 %v231, %v317
      %vm322 = vcmask 64512
      %323 = vst.msk [vmem:[#allocation2] sm:$0xff] %vm322, %v320
      %324 = vst.msk [vmem:[#allocation2 + $0x8] sm:$0xff] %vm322, %v321
      // Predicated region
      $region33: #{tpu_custom_call.1} parent=27 // pred_check
        %p325 = pneg %p223
      $region34: #{tpu_custom_call.1} parent=27 // pred_check_branch
        %327 = sbr.rel (%p325) target = $region36
      $region35: #{tpu_custom_call.1} parent=27 // pred_region
        %v328 = vld [vmem:[#allocation2] sm:$0xff]
        %v329 = vld [vmem:[#allocation2 + $0x8] sm:$0xff]
        %330 = vst.msk [vmem:[%s221] sm:$0xff] %vm322, %v328
        %331 = vst.msk [vmem:[%s221 + $0x8] sm:$0xff] %vm322, %v329
      $region36: #{tpu_custom_call.1} parent=27 // pred_fallthru
        _
      %s332 = smul.u32 2, %s19
      %p333 = scmp.lt.s32.totalorder %s18, 11
      %s334 = scalar_select %p333, %s18, 11
      %p335 = scmp.lt.s32.totalorder %s332, 1
      %s336 = scalar_select %p335, %s332, 1
      %s337 = smul.addr %s334, 2
      %s338 = sadd.s32 %s336, %s337
      %s339 = smul.addr %s338, 8
      %s340 = scalar_lea.vmem %s2, %s339
      // Predicated region
      $region37: #{tpu_custom_call.1} parent=27 // pred_check
        %p341 = pneg %p108
      $region38: #{tpu_custom_call.1} parent=27 // pred_check_branch
        %343 = sbr.rel (%p341) target = $region40
      $region39: #{tpu_custom_call.1} parent=27 // pred_region
        %s344 = smul.u32 2, %s19
      $region40: #{tpu_custom_call.1} parent=27 // pred_fallthru
        _
    $region28: #{tpu_custom_call.1} parent=5 // pred_fallthru
      _
    %p345 = scmp.le.s32.totalorder 2, %s8
    // Predicated region
    $region41: #{tpu_custom_call.1} parent=5 // pred_check
      %p346 = pneg %p345
    $region42: #{tpu_custom_call.1} parent=5 // pred_check_branch
      %348 = sbr.rel (%p346) target = $region44
    $region43: #{tpu_custom_call.1} parent=5 // pred_region
      %s349 = ssub.s32 %s8, 2
      // Predicated region
      $region45: #{tpu_custom_call.1} parent=43 // pred_check
        %p350 = pneg %p114
      $region46: #{tpu_custom_call.1} parent=43 // pred_check_branch
        %352 = sbr.rel (%p350) target = $region48
      $region47: #{tpu_custom_call.1} parent=43 // pred_region
        %s353 = smul.u32 2, %s22
        %p354 = scmp.lt.s32.totalorder %s21, 11
        %s355 = scalar_select %p354, %s21, 11
        %p356 = scmp.lt.s32.totalorder %s353, 1
        %s357 = scalar_select %p356, %s353, 1
        %s358 = smul.addr %s355, 2
        %s359 = sadd.s32 %s357, %s358
        %s360 = smul.addr %s359, 8
        %s361 = scalar_lea.vmem %s2, %s360
      $region48: #{tpu_custom_call.1} parent=43 // pred_fallthru
        _
    $region44: #{tpu_custom_call.1} parent=5 // pred_fallthru
      _
  $region6: #{tpu_custom_call.1} parent=0 // loop_footer
    %s12 = sadd.s32 1, %s8
  $region7: #{tpu_custom_call.1} parent=0 // loop_footer_branch
    %7 = sbr.rel target = $region3
  $region8: #{tpu_custom_call.1} parent=0 // loop_exit
    _

</llo_original>
